<compile_context>
chip_gen: v7x
topology: tpu7x:2x2x1
jax: 0.10.0
libtpu: 0.0.40
codegen_flags: <defaults>
</compile_context>

<pallas_src>
import jax
import jax.numpy as jnp
from jax import lax
from jax.experimental import pallas as pl
from jax.experimental.pallas import tpu as pltpu


def _mlp_kernel(x_ref, w1_ref, b1_ref, w2_ref, b2_ref, w3_ref, b3_ref, o_ref):
    # x_ref:  (bt, D_in)   bf16  -- natural row-major tile of the input
    # wN_ref: (out, in)    bf16  -- PyTorch layout, resident across grid steps
    # bN_ref: (out, 1)     f32
    # o_ref:  (D_out, bt)  f32   -- transposed / lane-dense output tile (batch on lanes)
    x = x_ref[...]

    # Layer 1: z1^T = W1 @ x^T  -> (16, bt); contraction on in_features keeps x row-major.
    z1 = lax.dot_general(
        w1_ref[...], x,
        dimension_numbers=(((1,), (1,)), ((), ())),
        preferred_element_type=jnp.float32,
    ) + b1_ref[...]
    h1 = jax.nn.sigmoid(z1).astype(jnp.bfloat16)

    # Layer 2: (16, 16) @ (16, bt) -> (16, bt)
    z2 = jnp.dot(w2_ref[...], h1, preferred_element_type=jnp.float32) + b2_ref[...]
    h2 = jax.nn.sigmoid(z2).astype(jnp.bfloat16)

    # Layer 3: (D_out, 16) @ (16, bt) -> (D_out, bt)
    z3 = jnp.dot(w3_ref[...], h2, preferred_element_type=jnp.float32) + b3_ref[...]
    o_ref[...] = jax.nn.sigmoid(z3).astype(o_ref.dtype)


def grant_sanderson_forward(x, params, *, batch_tile=256):
    """Fused forward pass of GrantSandersonModel.

    x:      [B, input_size] float array.
    params: dict with PyTorch-layout weights wN (out, in) and biases bN (out,).
    Returns [B, output_size] float32 (same semantics as the nn.Module).
    """
    assert batch_tile % 128 == 0, "batch_tile must be a multiple of 128 (lane axis)"
    B, D_in = x.shape
    w1, b1 = params["w1"], params["b1"]   # (16, D_in), (16,)
    w2, b2 = params["w2"], params["b2"]   # (16, 16),   (16,)
    w3, b3 = params["w3"], params["b3"]   # (D_out,16), (D_out,)
    D_out = w3.shape[0]

    # Compute dtype: bf16 inputs/weights (halves x HBM traffic), f32 accumulation/sigmoid.
    x_b = x.astype(jnp.bfloat16)
    w1b, w2b, w3b = (w.astype(jnp.bfloat16) for w in (w1, w2, w3))
    b1c, b2c, b3c = (b.astype(jnp.float32)[:, None] for b in (b1, b2, b3))

    # Pad the batch to a multiple of the tile; rows are independent so padding is sliced off.
    n_tiles = pl.cdiv(B, batch_tile)
    padded_B = n_tiles * batch_tile
    if padded_B != B:
        x_b = jnp.pad(x_b, ((0, padded_B - B), (0, 0)))

    # Constant index maps -> weights/biases stay resident in VMEM (no per-step DMA).
    resident = lambda arr: pl.BlockSpec(arr.shape, lambda i: (0, 0))

    out_t = pl.pallas_call(
        _mlp_kernel,
        out_shape=jax.ShapeDtypeStruct((D_out, padded_B), jnp.float32),
        grid_spec=pltpu.PrefetchScalarGridSpec(
            num_scalar_prefetch=0,
            grid=(n_tiles,),
            in_specs=[
                pl.BlockSpec((batch_tile, D_in), lambda i: (i, 0)),  # x batch tile
                resident(w1b), resident(b1c),
                resident(w2b), resident(b2c),
                resident(w3b), resident(b3c),
            ],
            # Lane-dense output: batch (multiple of 128) on the lane axis.
            out_specs=pl.BlockSpec((D_out, batch_tile), lambda i: (0, i)),
        ),
        compiler_params=pltpu.CompilerParams(
            dimension_semantics=("parallel",),
        ),
    )(x_b, w1b, b1c, w2b, b2c, w3b, b3c)

    # Back to the module's [batch, output] layout and original batch size.
    return out_t[:, :B].T


def init_params(key, input_size, output_size):
    """Deterministic init mimicking nn.Linear shapes (weight: (out, in), bias: (out,))."""
    ks = jax.random.split(key, 6)

    def linear_init(kw, kb, fan_in, fan_out):
        bound = 1.0 / jnp.sqrt(jnp.float32(fan_in))
        w = jax.random.uniform(kw, (fan_out, fan_in), jnp.float32, -bound, bound)
        b = jax.random.uniform(kb, (fan_out,), jnp.float32, -bound, bound)
        return w, b

    w1, b1 = linear_init(ks[0], ks[1], input_size, 16)
    w2, b2 = linear_init(ks[2], ks[3], 16, 16)
    w3, b3 = linear_init(ks[4], ks[5], 16, output_size)
    return {"w1": w1, "b1": b1, "w2": w2, "b2": b2, "w3": w3, "b3": b3}


def reference_forward_f32(x, p):
    """Pure f32 reference matching the PyTorch module."""
    h = jax.nn.sigmoid(x @ p["w1"].T + p["b1"])
    h = jax.nn.sigmoid(h @ p["w2"].T + p["b2"])
    return jax.nn.sigmoid(h @ p["w3"].T + p["b3"])


def reference_forward_bf16(x, p):
    """XLA reference using the same bf16-operand / f32-accumulate numerics as the kernel."""
    def layer(h, w, b):
        z = jnp.dot(h.astype(jnp.bfloat16), w.astype(jnp.bfloat16).T,
                    preferred_element_type=jnp.float32) + b
        return jax.nn.sigmoid(z)
    h = layer(x, p["w1"], p["b1"])
    h = layer(h, p["w2"], p["b2"])
    return layer(h, p["w3"], p["b3"])


if __name__ == "__main__":
    key = jax.random.PRNGKey(0)
    k_params, k_x = jax.random.split(key)

    # MNIST-like small shapes; batch=300 is deliberately NOT a multiple of the batch tile
    # (exercises the padded last tile) and gives a 2-step grid (keeps both v7x TCs busy).
    batch, input_size, output_size = 300, 64, 10
    params = init_params(k_params, input_size, output_size)
    x = jax.random.normal(k_x, (batch, input_size), jnp.float32)

    out = grant_sanderson_forward(x, params, batch_tile=256)
    out = jax.block_until_ready(out)
    assert out.shape == (batch, output_size)

    # Check vs an XLA reference with the kernel's exact bf16/f32 numerics.
    ref_b = reference_forward_bf16(x, params)
    assert jnp.allclose(out, ref_b, atol=5e-3, rtol=0), "mismatch vs bf16 reference"

    # Looser check vs the pure-f32 PyTorch-equivalent reference (bf16 input quantization).
    ref_f = reference_forward_f32(x, params)
    assert jnp.allclose(out, ref_f, atol=2e-2, rtol=0), "mismatch vs f32 reference"

    print("KERNEL_OK")
</pallas_src>

<mosaic_0001>
module attributes {stable_mosaic.version = 11 : i64} {
  func.func @_mlp_kernel(%arg0: i32, %arg1: memref<256x64xbf16, #tpu.memory_space<vmem>>, %arg2: memref<16x64xbf16, #tpu.memory_space<vmem>>, %arg3: memref<16x1xf32, #tpu.memory_space<vmem>>, %arg4: memref<16x16xbf16, #tpu.memory_space<vmem>>, %arg5: memref<16x1xf32, #tpu.memory_space<vmem>>, %arg6: memref<10x16xbf16, #tpu.memory_space<vmem>>, %arg7: memref<10x1xf32, #tpu.memory_space<vmem>>, %arg8: memref<10x256xf32, #tpu.memory_space<vmem>>) attributes {dimension_semantics = [#tpu.dimension_semantics<parallel>], iteration_bounds = array<i64: 2>, scalar_prefetch = 0 : i64, scratch_operands = 0 : i64, tpu.core_type = #tpu.core_type<tc>, window_params = [{transform_indices = @transform_0, window_bounds = array<i64: 256, 64>}, {pipeline_mode = #tpu.pipeline_mode<synchronous>, transform_indices = @transform_1, window_bounds = array<i64: 16, 64>}, {pipeline_mode = #tpu.pipeline_mode<synchronous>, transform_indices = @transform_2, window_bounds = array<i64: 16, 1>}, {pipeline_mode = #tpu.pipeline_mode<synchronous>, transform_indices = @transform_3, window_bounds = array<i64: 16, 16>}, {pipeline_mode = #tpu.pipeline_mode<synchronous>, transform_indices = @transform_4, window_bounds = array<i64: 16, 1>}, {pipeline_mode = #tpu.pipeline_mode<synchronous>, transform_indices = @transform_5, window_bounds = array<i64: 10, 16>}, {pipeline_mode = #tpu.pipeline_mode<synchronous>, transform_indices = @transform_6, window_bounds = array<i64: 10, 1>}, {transform_indices = @transform_7, window_bounds = array<i64: 10, 256>}]} {
    %c0 = arith.constant 0 : index
    %c0_0 = arith.constant 0 : index
    %0 = vector.load %arg1[%c0, %c0_0] : memref<256x64xbf16, #tpu.memory_space<vmem>>, vector<256x64xbf16>
    %c0_1 = arith.constant 0 : index
    %c0_2 = arith.constant 0 : index
    %1 = vector.load %arg2[%c0_1, %c0_2] : memref<16x64xbf16, #tpu.memory_space<vmem>>, vector<16x64xbf16>
    %cst = arith.constant dense<0.000000e+00> : vector<16x256xf32>
    %2 = tpu.matmul %1, %0, %cst {dimension_numbers = #tpu.dot_dimension_numbers<[1], [1], [0], [0], [0, 0, 1, 0], [], []>} : vector<16x64xbf16>, vector<256x64xbf16>, vector<16x256xf32> -> vector<16x256xf32>
    %c0_3 = arith.constant 0 : index
    %c0_4 = arith.constant 0 : index
    %3 = vector.load %arg3[%c0_3, %c0_4] : memref<16x1xf32, #tpu.memory_space<vmem>>, vector<16x1xf32>
    %4 = vector.broadcast %3 : vector<16x1xf32> to vector<16x256xf32>
    %5 = arith.addf %2, %4 : vector<16x256xf32>
    %6 = arith.negf %5 : vector<16x256xf32>
    %7 = math.exp %6 : vector<16x256xf32>
    %cst_5 = arith.constant 1.000000e+00 : f32
    %8 = vector.broadcast %cst_5 : f32 to vector<16x256xf32>
    %9 = arith.addf %8, %7 : vector<16x256xf32>
    %10 = arith.divf %8, %9 : vector<16x256xf32>
    %11 = arith.truncf %10 : vector<16x256xf32> to vector<16x256xbf16>
    %c0_6 = arith.constant 0 : index
    %c0_7 = arith.constant 0 : index
    %12 = vector.load %arg4[%c0_6, %c0_7] : memref<16x16xbf16, #tpu.memory_space<vmem>>, vector<16x16xbf16>
    %cst_8 = arith.constant dense<0.000000e+00> : vector<16x256xf32>
    %13 = tpu.matmul %12, %11, %cst_8 {dimension_numbers = #tpu.dot_dimension_numbers<[1], [0], [0], [1], [0, 0, 1, 1], [], []>} : vector<16x16xbf16>, vector<16x256xbf16>, vector<16x256xf32> -> vector<16x256xf32>
    %c0_9 = arith.constant 0 : index
    %c0_10 = arith.constant 0 : index
    %14 = vector.load %arg5[%c0_9, %c0_10] : memref<16x1xf32, #tpu.memory_space<vmem>>, vector<16x1xf32>
    %15 = vector.broadcast %14 : vector<16x1xf32> to vector<16x256xf32>
    %16 = arith.addf %13, %15 : vector<16x256xf32>
    %17 = arith.negf %16 : vector<16x256xf32>
    %18 = math.exp %17 : vector<16x256xf32>
    %cst_11 = arith.constant 1.000000e+00 : f32
    %19 = vector.broadcast %cst_11 : f32 to vector<16x256xf32>
    %20 = arith.addf %19, %18 : vector<16x256xf32>
    %21 = arith.divf %19, %20 : vector<16x256xf32>
    %22 = arith.truncf %21 : vector<16x256xf32> to vector<16x256xbf16>
    %c0_12 = arith.constant 0 : index
    %c0_13 = arith.constant 0 : index
    %23 = vector.load %arg6[%c0_12, %c0_13] : memref<10x16xbf16, #tpu.memory_space<vmem>>, vector<10x16xbf16>
    %cst_14 = arith.constant dense<0.000000e+00> : vector<10x256xf32>
    %24 = tpu.matmul %23, %22, %cst_14 {dimension_numbers = #tpu.dot_dimension_numbers<[1], [0], [0], [1], [0, 0, 1, 1], [], []>} : vector<10x16xbf16>, vector<16x256xbf16>, vector<10x256xf32> -> vector<10x256xf32>
    %c0_15 = arith.constant 0 : index
    %c0_16 = arith.constant 0 : index
    %25 = vector.load %arg7[%c0_15, %c0_16] : memref<10x1xf32, #tpu.memory_space<vmem>>, vector<10x1xf32>
    %26 = vector.broadcast %25 : vector<10x1xf32> to vector<10x256xf32>
    %27 = arith.addf %24, %26 : vector<10x256xf32>
    %28 = arith.negf %27 : vector<10x256xf32>
    %29 = math.exp %28 : vector<10x256xf32>
    %cst_17 = arith.constant 1.000000e+00 : f32
    %30 = vector.broadcast %cst_17 : f32 to vector<10x256xf32>
    %31 = arith.addf %30, %29 : vector<10x256xf32>
    %32 = arith.divf %30, %31 : vector<10x256xf32>
    %c0_18 = arith.constant 0 : index
    %c0_19 = arith.constant 0 : index
    %33 = vector.load %arg8[%c0_18, %c0_19] : memref<10x256xf32, #tpu.memory_space<vmem>>, vector<10x256xf32>
    tpu.vector_store %arg8[%c0_18, %c0_19], %32 {strides = array<i32>} : memref<10x256xf32, #tpu.memory_space<vmem>>, vector<10x256xf32>,
    return
  }
  func.func @transform_0(%arg0: i32) -> (i32, i32) {
    %c0_i32 = arith.constant 0 : i32
    %c0_i32_0 = arith.constant 0 : i32
    return %arg0, %c0_i32 : i32, i32
  }
  func.func @transform_1(%arg0: i32) -> (i32, i32) {
    %c0_i32 = arith.constant 0 : i32
    %c0_i32_0 = arith.constant 0 : i32
    %c0_i32_1 = arith.constant 0 : i32
    return %c0_i32, %c0_i32_0 : i32, i32
  }
  func.func @transform_2(%arg0: i32) -> (i32, i32) {
    %c0_i32 = arith.constant 0 : i32
    %c0_i32_0 = arith.constant 0 : i32
    %c0_i32_1 = arith.constant 0 : i32
    return %c0_i32, %c0_i32_0 : i32, i32
  }
  func.func @transform_3(%arg0: i32) -> (i32, i32) {
    %c0_i32 = arith.constant 0 : i32
    %c0_i32_0 = arith.constant 0 : i32
    %c0_i32_1 = arith.constant 0 : i32
    return %c0_i32, %c0_i32_0 : i32, i32
  }
  func.func @transform_4(%arg0: i32) -> (i32, i32) {
    %c0_i32 = arith.constant 0 : i32
    %c0_i32_0 = arith.constant 0 : i32
    %c0_i32_1 = arith.constant 0 : i32
    return %c0_i32, %c0_i32_0 : i32, i32
  }
  func.func @transform_5(%arg0: i32) -> (i32, i32) {
    %c0_i32 = arith.constant 0 : i32
    %c0_i32_0 = arith.constant 0 : i32
    %c0_i32_1 = arith.constant 0 : i32
    return %c0_i32, %c0_i32_0 : i32, i32
  }
  func.func @transform_6(%arg0: i32) -> (i32, i32) {
    %c0_i32 = arith.constant 0 : i32
    %c0_i32_0 = arith.constant 0 : i32
    %c0_i32_1 = arith.constant 0 : i32
    return %c0_i32, %c0_i32_0 : i32, i32
  }
  func.func @transform_7(%arg0: i32) -> (i32, i32) {
    %c0_i32 = arith.constant 0 : i32
    %c0_i32_0 = arith.constant 0 : i32
    return %c0_i32, %arg0 : i32, i32
  }
}

</mosaic_0001>

<llo_original>
// kernel: tpu_custom_call.1
$region0: #{tpu_custom_call.1}
  #allocation0 [shape = 'u32[]', space=smem, size = 0x4, offset = 0x4, fixed_abs, tag = 'smem constant byte address 0x4 - core index']
  #allocation1 [shape = 'u32[144,128]{1,0:T(1,128)}', space=vmem, size = 0x12000, scoped, tag = 'internal scratch']
  %s0 = inlined_call_operand.vmem [shape: bf16[512,64], index: 0, kind: input, shape index: {}]
  %s1 = inlined_call_operand.vmem [shape: bf16[16,64], index: 1, kind: input, shape index: {}]
  %s2 = inlined_call_operand.vmem [shape: f32[16,1], index: 2, kind: input, shape index: {}]
  %s3 = inlined_call_operand.vmem [shape: bf16[16,16], index: 3, kind: input, shape index: {}]
  %s4 = inlined_call_operand.vmem [shape: f32[16,1], index: 4, kind: input, shape index: {}]
  %s5 = inlined_call_operand.vmem [shape: bf16[10,16], index: 5, kind: input, shape index: {}]
  %s6 = inlined_call_operand.vmem [shape: f32[10,1], index: 6, kind: input, shape index: {}]
  %s7 = inlined_call_operand.hbm [shape: f32[10,512], index: 7, kind: output, shape index: {}]
  %s8 = sld [smem:[#allocation0]]
  $region61: #{tpu_custom_call.1} parent=0
    _
  %s10 = ssub.s32 1, %s8
  %s11 = scalar_select 0, %s10, %s8
  $region1: #{tpu_custom_call.1} parent=0
    #allocation2 [shape = 'u8[32768]{0}', space=vmem, size = 0x8000, scoped, tag = 'output window, operand 0']
    #allocation3 [shape = 's32[2]{0}', space=sflag, size = 0x8, scoped, tag = 'scoped memory for tpu_custom_call.1']
    %12 = vsyncpa [#allocation3], 0
    %s13 = scalar_lea.sflag [#allocation3], 1
    %14 = vsyncpa %s13, 0
    loop: start=0, step=1, limit=4
    $region2: #{tpu_custom_call.1} parent=1 // loop_pre_header
      _
    $region3: #{tpu_custom_call.1} parent=1 // loop_header
      %s16 = sphi 0, %s20
      %p17 = scmp.ge.s32.totalorder %s16, 4
      %s26 = sphi 0, %s28
      %s29 = sphi 0, %s26
      %s30 = sphi 0, %s29
      %s46 = sphi 0, %s30
      %s50 = sphi 0, %s50
      %s52 = sphi 0, %s50
      %s53 = sphi 0, %s52
      %s67 = sphi 0, %s53
      %s71 = sphi 0, %s71
      %s73 = sphi 0, %s71
      %s74 = sphi 0, %s73
      %s88 = sphi 0, %s74
      %s92 = sphi 0, %s92
      %s94 = sphi 0, %s92
      %s95 = sphi 0, %s94
      %s109 = sphi 0, %s95
      %s113 = sphi 0, %s113
      %s115 = sphi 0, %s113
      %s116 = sphi 0, %s115
      %s130 = sphi 0, %s116
      %s134 = sphi 0, %s134
      %s136 = sphi 0, %s134
      %s137 = sphi 0, %s136
      %s151 = sphi 0, %s137
      %s155 = sphi 0, %s155
      %s157 = sphi 0, %s155
      %s158 = sphi 0, %s157
      %s172 = sphi 0, %s158
      %s178 = sphi 0, %s180
      %s181 = sphi 0, %s178
      %s182 = sphi 0, %s181
      %s198 = sphi 0, %s182
    $region4: #{tpu_custom_call.1} parent=1 // loop_header_branch
      %19 = sbr.rel (%p17) target = $region8
    $region5: #{tpu_custom_call.1} parent=1 // loop_body
      %s21 = ssub.s32 %s16, 1
      %s22 = ssub.s32 %s16, 2
      %s23 = sadd.s32 %s16, 1
      %s24 = ssub.s32 %s16, %s23
      %p25 = scmp.eq.s32.totalorder %s24, 0
      %s27 = sadd.s32 %s26, 1
      %s28 = scalar_select %p25, %s26, %s27
      %p31 = pneg %p25
      %p32 = scmp.eq.s32.totalorder %s16, 1
      %p33 = por %p31, %p32
      %p34 = scmp.ne.s32.totalorder %s26, %s29
      %p35 = scmp.eq.s32.totalorder %s16, 0
      %p36 = por %p34, %p35
      %p37 = scmp.ne.s32.totalorder %s26, %s29
      %p38 = scmp.eq.s32.totalorder %s21, 1
      %p39 = por %p37, %p38
      %p40 = scmp.ne.s32.totalorder %s29, %s30
      %p41 = scmp.eq.s32.totalorder %s21, 0
      %p42 = por %p40, %p41
      %p43 = scmp.ne.s32.totalorder %s29, %s30
      %p44 = scmp.eq.s32.totalorder %s22, 1
      %p45 = por %p43, %p44
      %p47 = scmp.ne.s32.totalorder %s30, %s46
      %p48 = scmp.eq.s32.totalorder %s22, 0
      %p49 = por %p47, %p48
      %s51 = sadd.s32 %s50, 1
      %p54 = scmp.eq.s32.totalorder %s16, 1
      %p55 = scmp.ne.s32.totalorder %s50, %s52
      %p56 = scmp.eq.s32.totalorder %s16, 0
      %p57 = por %p55, %p56
      %p58 = scmp.ne.s32.totalorder %s50, %s52
      %p59 = scmp.eq.s32.totalorder %s21, 1
      %p60 = por %p58, %p59
      %p61 = scmp.ne.s32.totalorder %s52, %s53
      %p62 = scmp.eq.s32.totalorder %s21, 0
      %p63 = por %p61, %p62
      %p64 = scmp.ne.s32.totalorder %s52, %s53
      %p65 = scmp.eq.s32.totalorder %s22, 1
      %p66 = por %p64, %p65
      %p68 = scmp.ne.s32.totalorder %s53, %s67
      %p69 = scmp.eq.s32.totalorder %s22, 0
      %p70 = por %p68, %p69
      %s72 = sadd.s32 %s71, 1
      %p75 = scmp.eq.s32.totalorder %s16, 1
      %p76 = scmp.ne.s32.totalorder %s71, %s73
      %p77 = scmp.eq.s32.totalorder %s16, 0
      %p78 = por %p76, %p77
      %p79 = scmp.ne.s32.totalorder %s71, %s73
      %p80 = scmp.eq.s32.totalorder %s21, 1
      %p81 = por %p79, %p80
      %p82 = scmp.ne.s32.totalorder %s73, %s74
      %p83 = scmp.eq.s32.totalorder %s21, 0
      %p84 = por %p82, %p83
      %p85 = scmp.ne.s32.totalorder %s73, %s74
      %p86 = scmp.eq.s32.totalorder %s22, 1
      %p87 = por %p85, %p86
      %p89 = scmp.ne.s32.totalorder %s74, %s88
      %p90 = scmp.eq.s32.totalorder %s22, 0
      %p91 = por %p89, %p90
      %s93 = sadd.s32 %s92, 1
      %p96 = scmp.eq.s32.totalorder %s16, 1
      %p97 = scmp.ne.s32.totalorder %s92, %s94
      %p98 = scmp.eq.s32.totalorder %s16, 0
      %p99 = por %p97, %p98
      %p100 = scmp.ne.s32.totalorder %s92, %s94
      %p101 = scmp.eq.s32.totalorder %s21, 1
      %p102 = por %p100, %p101
      %p103 = scmp.ne.s32.totalorder %s94, %s95
      %p104 = scmp.eq.s32.totalorder %s21, 0
      %p105 = por %p103, %p104
      %p106 = scmp.ne.s32.totalorder %s94, %s95
      %p107 = scmp.eq.s32.totalorder %s22, 1
      %p108 = por %p106, %p107
      %p110 = scmp.ne.s32.totalorder %s95, %s109
      %p111 = scmp.eq.s32.totalorder %s22, 0
      %p112 = por %p110, %p111
      %s114 = sadd.s32 %s113, 1
      %p117 = scmp.eq.s32.totalorder %s16, 1
      %p118 = scmp.ne.s32.totalorder %s113, %s115
      %p119 = scmp.eq.s32.totalorder %s16, 0
      %p120 = por %p118, %p119
      %p121 = scmp.ne.s32.totalorder %s113, %s115
      %p122 = scmp.eq.s32.totalorder %s21, 1
      %p123 = por %p121, %p122
      %p124 = scmp.ne.s32.totalorder %s115, %s116
      %p125 = scmp.eq.s32.totalorder %s21, 0
      %p126 = por %p124, %p125
      %p127 = scmp.ne.s32.totalorder %s115, %s116
      %p128 = scmp.eq.s32.totalorder %s22, 1
      %p129 = por %p127, %p128
      %p131 = scmp.ne.s32.totalorder %s116, %s130
      %p132 = scmp.eq.s32.totalorder %s22, 0
      %p133 = por %p131, %p132
      %s135 = sadd.s32 %s134, 1
      %p138 = scmp.eq.s32.totalorder %s16, 1
      %p139 = scmp.ne.s32.totalorder %s134, %s136
      %p140 = scmp.eq.s32.totalorder %s16, 0
      %p141 = por %p139, %p140
      %p142 = scmp.ne.s32.totalorder %s134, %s136
      %p143 = scmp.eq.s32.totalorder %s21, 1
      %p144 = por %p142, %p143
      %p145 = scmp.ne.s32.totalorder %s136, %s137
      %p146 = scmp.eq.s32.totalorder %s21, 0
      %p147 = por %p145, %p146
      %p148 = scmp.ne.s32.totalorder %s136, %s137
      %p149 = scmp.eq.s32.totalorder %s22, 1
      %p150 = por %p148, %p149
      %p152 = scmp.ne.s32.totalorder %s137, %s151
      %p153 = scmp.eq.s32.totalorder %s22, 0
      %p154 = por %p152, %p153
      %s156 = sadd.s32 %s155, 1
      %p159 = scmp.eq.s32.totalorder %s16, 1
      %p160 = scmp.ne.s32.totalorder %s155, %s157
      %p161 = scmp.eq.s32.totalorder %s16, 0
      %p162 = por %p160, %p161
      %p163 = scmp.ne.s32.totalorder %s155, %s157
      %p164 = scmp.eq.s32.totalorder %s21, 1
      %p165 = por %p163, %p164
      %p166 = scmp.ne.s32.totalorder %s157, %s158
      %p167 = scmp.eq.s32.totalorder %s21, 0
      %p168 = por %p166, %p167
      %p169 = scmp.ne.s32.totalorder %s157, %s158
      %p170 = scmp.eq.s32.totalorder %s22, 1
      %p171 = por %p169, %p170
      %p173 = scmp.ne.s32.totalorder %s158, %s172
      %p174 = scmp.eq.s32.totalorder %s22, 0
      %p175 = por %p173, %p174
      %s176 = ssub.s32 %s16, %s23
      %p177 = scmp.eq.s32.totalorder %s176, 0
      %s179 = sadd.s32 %s178, 1
      %s180 = scalar_select %p177, %s178, %s179
      %p183 = pneg %p177
      %p184 = scmp.eq.s32.totalorder %s16, 1
      %p185 = por %p183, %p184
      %p186 = scmp.ne.s32.totalorder %s178, %s181
      %p187 = scmp.eq.s32.totalorder %s16, 0
      %p188 = por %p186, %p187
      %p189 = scmp.ne.s32.totalorder %s178, %s181
      %p190 = scmp.eq.s32.totalorder %s21, 1
      %p191 = por %p189, %p190
      %p192 = scmp.ne.s32.totalorder %s181, %s182
      %p193 = scmp.eq.s32.totalorder %s21, 0
      %p194 = por %p192, %p193
      %p195 = scmp.ne.s32.totalorder %s181, %s182
      %p196 = scmp.eq.s32.totalorder %s22, 1
      %p197 = por %p195, %p196
      %p199 = scmp.ne.s32.totalorder %s182, %s198
      %p200 = scmp.eq.s32.totalorder %s22, 0
      %p201 = por %p199, %p200
      %p202 = scmp.le.s32.totalorder 1, %s16
      %p203 = scmp.lt.s32.totalorder %s16, 3
      %p204 = pnand %p202, %p203
      %p205 = pneg %p204
      // Predicated region
      $region9: #{tpu_custom_call.1} parent=5 // pred_check
        _
      $region10: #{tpu_custom_call.1} parent=5 // pred_check_branch
        %207 = sbr.rel (%p204) target = $region12
      $region11: #{tpu_custom_call.1} parent=5 // pred_region
        %s208 = ssub.s32 %s16, 1
        // Predicated region
        $region13: #{tpu_custom_call.1} parent=11 // pred_check
          %p209 = pneg %p63
        $region14: #{tpu_custom_call.1} parent=11 // pred_check_branch
          %211 = sbr.rel (%p209) target = $region16
        $region15: #{tpu_custom_call.1} parent=11 // pred_region
          _
        $region16: #{tpu_custom_call.1} parent=11 // pred_fallthru
          _
        // Predicated region
        $region17: #{tpu_custom_call.1} parent=11 // pred_check
          %p212 = pneg %p84
        $region18: #{tpu_custom_call.1} parent=11 // pred_check_branch
          %214 = sbr.rel (%p212) target = $region20
        $region19: #{tpu_custom_call.1} parent=11 // pred_region
          _
        $region20: #{tpu_custom_call.1} parent=11 // pred_fallthru
          _
        // Predicated region
        $region21: #{tpu_custom_call.1} parent=11 // pred_check
          %p215 = pneg %p105
        $region22: #{tpu_custom_call.1} parent=11 // pred_check_branch
          %217 = sbr.rel (%p215) target = $region24
        $region23: #{tpu_custom_call.1} parent=11 // pred_region
          _
        $region24: #{tpu_custom_call.1} parent=11 // pred_fallthru
          _
        // Predicated region
        $region25: #{tpu_custom_call.1} parent=11 // pred_check
          %p218 = pneg %p126
        $region26: #{tpu_custom_call.1} parent=11 // pred_check_branch
          %220 = sbr.rel (%p218) target = $region28
        $region27: #{tpu_custom_call.1} parent=11 // pred_region
          _
        $region28: #{tpu_custom_call.1} parent=11 // pred_fallthru
          _
        // Predicated region
        $region29: #{tpu_custom_call.1} parent=11 // pred_check
          %p221 = pneg %p147
        $region30: #{tpu_custom_call.1} parent=11 // pred_check_branch
          %223 = sbr.rel (%p221) target = $region32
        $region31: #{tpu_custom_call.1} parent=11 // pred_region
          _
        $region32: #{tpu_custom_call.1} parent=11 // pred_fallthru
          _
        // Predicated region
        $region33: #{tpu_custom_call.1} parent=11 // pred_check
          %p224 = pneg %p168
        $region34: #{tpu_custom_call.1} parent=11 // pred_check_branch
          %226 = sbr.rel (%p224) target = $region36
        $region35: #{tpu_custom_call.1} parent=11 // pred_region
          _
        $region36: #{tpu_custom_call.1} parent=11 // pred_fallthru
          _
      $region12: #{tpu_custom_call.1} parent=5 // pred_fallthru
        _
      %p227 = scmp.lt.s32.totalorder %s16, 2
      // Predicated region
      $region37: #{tpu_custom_call.1} parent=5 // pred_check
        %p228 = pneg %p227
      $region38: #{tpu_custom_call.1} parent=5 // pred_check_branch
        %230 = sbr.rel (%p228) target = $region40
      $region39: #{tpu_custom_call.1} parent=5 // pred_region
        // Predicated region
        $region41: #{tpu_custom_call.1} parent=39 // pred_check
          %p231 = pneg %p36
        $region42: #{tpu_custom_call.1} parent=39 // pred_check_branch
          %233 = sbr.rel (%p231) target = $region44
        $region43: #{tpu_custom_call.1} parent=39 // pred_region
          %s234 = smul.u32 32, %s16
          %p235 = scmp.lt.s32.totalorder %s234, 63
          %s236 = scalar_select %p235, %s234, 63
          %s237 = smul.addr %s236, 4
          %s238 = scalar_lea.vmem %s0, %s237
          %s239 = smul.u32 32, %s16
        $region44: #{tpu_custom_call.1} parent=39 // pred_fallthru
          _
      $region40: #{tpu_custom_call.1} parent=5 // pred_fallthru
        _
      %p240 = scmp.le.s32.totalorder 1, %s16
      %p241 = scmp.lt.s32.totalorder %s16, 3
      %p242 = pnand %p240, %p241
      %p243 = pneg %p242
      // Predicated region
      $region45: #{tpu_custom_call.1} parent=5 // pred_check
        _
      $region46: #{tpu_custom_call.1} parent=5 // pred_check_branch
        %245 = sbr.rel (%p242) target = $region48
      $region47: #{tpu_custom_call.1} parent=5 // pred_region
        %s246 = ssub.s32 %s16, 1
        %s247 = smul.u32 32, %s21
        %p248 = scmp.lt.s32.totalorder %s247, 63
        %s249 = scalar_select %p248, %s247, 63
        %s250 = smul.addr %s249, 4
        %s251 = scalar_lea.vmem %s0, %s250
        %p252 = pneg %p42
        %p253 = pneg %p39
        %p254 = pneg %p63
        %p255 = pneg %p60
        %p256 = pneg %p84
        %p257 = pneg %p81
        %p258 = pneg %p105
        %p259 = pneg %p102
        %p260 = pneg %p126
        %p261 = pneg %p123
        %p262 = pneg %p147
        %p263 = pneg %p144
        %p264 = pneg %p168
        %p265 = pneg %p165
        %p266 = pneg %p194
        %p267 = pneg %p191
        %s268 = sand.u32 %s181, 1
        %s269 = scalar_lea.sflag [#allocation3], %s268
        %s270 = sand.u32 %s181, 1
        %s271 = smul.addr %s270, 32
        %s272 = scalar_lea.vmem [#allocation2], %s271
        %s273 = smul.u32 32, %s21
        %p274 = scmp.lt.s32.totalorder %s273, 63
        %s275 = scalar_select %p274, %s273, 63
        %s276 = smul.addr %s275, 4
        %s277 = scalar_lea.vmem %s0, %s276
        %s278 = smul.u32 32, %s21
        %s279 = smul.u32 2, %s21
        %v281 = vld [vmem:[%s277] sm:$0xf]
        %v282 = vld [vmem:[%s277 + $0x4] sm:$0xf]
        %v283 = vld [vmem:[%s277 + $0x8] sm:$0xf]
        %v284 = vld [vmem:[%s277 + $0xc] sm:$0xf]
        %v285 = vld [vmem:[%s277 + $0x10] sm:$0xf]
        %v286 = vld [vmem:[%s277 + $0x14] sm:$0xf]
        %v287 = vld [vmem:[%s277 + $0x18] sm:$0xf]
        %v288 = vld [vmem:[%s277 + $0x1c] sm:$0xf]
        %v289 = vld [vmem:[%s277 + $0x20] sm:$0xf]
        %v290 = vld [vmem:[%s277 + $0x24] sm:$0xf]
        %v291 = vld [vmem:[%s277 + $0x28] sm:$0xf]
        %v292 = vld [vmem:[%s277 + $0x2c] sm:$0xf]
        %v293 = vld [vmem:[%s277 + $0x30] sm:$0xf]
        %v294 = vld [vmem:[%s277 + $0x34] sm:$0xf]
        %v295 = vld [vmem:[%s277 + $0x38] sm:$0xf]
        %v296 = vld [vmem:[%s277 + $0x3c] sm:$0xf]
        %v297 = vld [vmem:[%s277 + $0x40] sm:$0xf]
        %v298 = vld [vmem:[%s277 + $0x44] sm:$0xf]
        %v299 = vld [vmem:[%s277 + $0x48] sm:$0xf]
        %v300 = vld [vmem:[%s277 + $0x4c] sm:$0xf]
        %v301 = vld [vmem:[%s277 + $0x50] sm:$0xf]
        %v302 = vld [vmem:[%s277 + $0x54] sm:$0xf]
        %v303 = vld [vmem:[%s277 + $0x58] sm:$0xf]
        %v304 = vld [vmem:[%s277 + $0x5c] sm:$0xf]
        %v305 = vld [vmem:[%s277 + $0x60] sm:$0xf]
        %v306 = vld [vmem:[%s277 + $0x64] sm:$0xf]
        %v307 = vld [vmem:[%s277 + $0x68] sm:$0xf]
        %v308 = vld [vmem:[%s277 + $0x6c] sm:$0xf]
        %v309 = vld [vmem:[%s277 + $0x70] sm:$0xf]
        %v310 = vld [vmem:[%s277 + $0x74] sm:$0xf]
        %v311 = vld [vmem:[%s277 + $0x78] sm:$0xf]
        %v312 = vld [vmem:[%s277 + $0x7c] sm:$0xf]
        %v313 = vld [vmem:[%s1] sm:$0xf]
        %v314 = vld [vmem:[%s1 + $0x4] sm:$0xf]
        %v315 = vld [vmem:[%s2] sm:$0xff]
        %v316 = vld [vmem:[%s2 + $0x8] sm:$0xff]
        %318 = vset.pattern.permute.xlu0 0
        %319 = vperm.xlu0 %318, %v315
        %v320 = vpop.permute.xlu0 %319
        %323 = vset.pattern.permute.xlu0 0
        %324 = vperm.xlu0 %323, %v316
        %v325 = vpop.permute.xlu0 %324
        %v329 = vunpack.c.l.b16 %v313
        %v330 = vunpack.c.l.b16 %v314
        %v331 = vpack.c.b16 %v330, %v329
        %v364 = vunpack.c.l.b16 %v281
        %v365 = vunpack.c.l.b16 %v282
        %v366 = vunpack.c.l.b16 %v283
        %v367 = vunpack.c.l.b16 %v284
        %v368 = vunpack.c.l.b16 %v285
        %v369 = vunpack.c.l.b16 %v286
        %v370 = vunpack.c.l.b16 %v287
        %v371 = vunpack.c.l.b16 %v288
        %v372 = vunpack.c.l.b16 %v289
        %v373 = vunpack.c.l.b16 %v290
        %v374 = vunpack.c.l.b16 %v291
        %v375 = vunpack.c.l.b16 %v292
        %v376 = vunpack.c.l.b16 %v293
        %v377 = vunpack.c.l.b16 %v294
        %v378 = vunpack.c.l.b16 %v295
        %v379 = vunpack.c.l.b16 %v296
        %v380 = vunpack.c.l.b16 %v297
        %v381 = vunpack.c.l.b16 %v298
        %v382 = vunpack.c.l.b16 %v299
        %v383 = vunpack.c.l.b16 %v300
        %v384 = vunpack.c.l.b16 %v301
        %v385 = vunpack.c.l.b16 %v302
        %v386 = vunpack.c.l.b16 %v303
        %v387 = vunpack.c.l.b16 %v304
        %v388 = vunpack.c.l.b16 %v305
        %v389 = vunpack.c.l.b16 %v306
        %v390 = vunpack.c.l.b16 %v307
        %v391 = vunpack.c.l.b16 %v308
        %v392 = vunpack.c.l.b16 %v309
        %v393 = vunpack.c.l.b16 %v310
        %v394 = vunpack.c.l.b16 %v311
        %v395 = vunpack.c.l.b16 %v312
        %v396 = vpack.c.b16 %v365, %v364
        %v397 = vpack.c.b16 %v367, %v366
        %v398 = vpack.c.b16 %v369, %v368
        %v399 = vpack.c.b16 %v371, %v370
        %v400 = vpack.c.b16 %v373, %v372
        %v401 = vpack.c.b16 %v375, %v374
        %v402 = vpack.c.b16 %v377, %v376
        %v403 = vpack.c.b16 %v379, %v378
        %v404 = vpack.c.b16 %v381, %v380
        %v405 = vpack.c.b16 %v383, %v382
        %v406 = vpack.c.b16 %v385, %v384
        %v407 = vpack.c.b16 %v387, %v386
        %v408 = vpack.c.b16 %v389, %v388
        %v409 = vpack.c.b16 %v391, %v390
        %v410 = vpack.c.b16 %v393, %v392
        %v411 = vpack.c.b16 %v395, %v394
        %vm412 = vcmask 523264
        %v414 = vsel %vm412, %v331, 0
        %v417 = vsel %vm412, %v396, 0
        %v420 = vsel %vm412, %v397, 0
        %v423 = vsel %vm412, %v398, 0
        %v426 = vsel %vm412, %v399, 0
        %v429 = vsel %vm412, %v400, 0
        %v432 = vsel %vm412, %v401, 0
        %v435 = vsel %vm412, %v402, 0
        %v438 = vsel %vm412, %v403, 0
        %v441 = vsel %vm412, %v404, 0
        %v444 = vsel %vm412, %v405, 0
        %v447 = vsel %vm412, %v406, 0
        %v450 = vsel %vm412, %v407, 0
        %v453 = vsel %vm412, %v408, 0
        %v456 = vsel %vm412, %v409, 0
        %v459 = vsel %vm412, %v410, 0
        %v462 = vsel %vm412, %v411, 0
        %464 = vmatprep.subr.bf16.mxu0 0
        %465 = vmatpush1.bf16.xpose.msra.mxu0 %v417
        %466 = vmatprep.subr.bf16.mxu0 0
        %467 = vmatpush1.bf16.xpose.msra.mxu0 %v420
        %468 = vmatprep.subr.bf16.mxu0 0
        %469 = vmatpush1.bf16.xpose.msra.mxu0 %v423
        %470 = vmatprep.subr.bf16.mxu0 0
        %471 = vmatpush1.bf16.xpose.msra.mxu0 %v426
        %472 = vmatprep.subr.bf16.mxu0 0
        %473 = vmatpush1.bf16.xpose.msra.mxu0 %v429
        %474 = vmatprep.subr.bf16.mxu0 0
        %475 = vmatpush1.bf16.xpose.msra.mxu0 %v432
        %476 = vmatprep.subr.bf16.mxu0 0
        %477 = vmatpush1.bf16.xpose.msra.mxu0 %v435
        %478 = vmatprep.subr.bf16.mxu0 0
        %479 = vmatpush1.bf16.xpose.msra.mxu0 %v438
        %480 = vmatprep.subr.bf16.mxu0 0
        %481 = vmatpush1.bf16.xpose.msra.mxu0 %v441
        %482 = vmatprep.subr.bf16.mxu0 0
        %483 = vmatpush1.bf16.xpose.msra.mxu0 %v444
        %484 = vmatprep.subr.bf16.mxu0 0
        %485 = vmatpush1.bf16.xpose.msra.mxu0 %v447
        %486 = vmatprep.subr.bf16.mxu0 0
        %487 = vmatpush1.bf16.xpose.msra.mxu0 %v450
        %488 = vmatprep.subr.bf16.mxu0 0
        %489 = vmatpush1.bf16.xpose.msra.mxu0 %v453
        %490 = vmatprep.subr.bf16.mxu0 0
        %491 = vmatpush1.bf16.xpose.msra.mxu0 %v456
        %492 = vmatprep.subr.bf16.mxu0 0
        %493 = vmatpush1.bf16.xpose.msra.mxu0 %v459
        %494 = vmatprep.subr.bf16.mxu0 0
        %495 = vmatpush1.bf16.xpose.msra.mxu0 %v462
        %496 = vmatprep.mubr.bf16.mxu0 0
        %497 = vmatmul.mubr.bf16.gmra.mrb[0].mxu0 %v414
        %v498 = vpop.f32.mrb[0].mxu0
        %v499 = vadd.f32 %v320, %v498
        %v500 = vpop.f32.mrb[0].mxu0
        %v501 = vadd.f32 %v320, %v500
        %v502 = vpop.f32.mrb[0].mxu0
        %v503 = vadd.f32 %v325, %v502
        %v504 = vpop.f32.mrb[0].mxu0
        %v505 = vadd.f32 %v325, %v504
        %506 = vdwg.mxu0
        %v507 = vxor.u32 %v499, 2147483648
        %v508 = vxor.u32 %v501, 2147483648
        %v509 = vxor.u32 %v503, 2147483648
        %v510 = vxor.u32 %v505, 2147483648
        %v511 = vmul.f32 %v507, 1.442695
        %v512 = vpow.pop %v511
        %v513 = vmul.f32 %v508, 1.442695
        %v514 = vpow.pop %v513
        %v515 = vmul.f32 %v509, 1.442695
        %v516 = vpow.pop %v515
        %v517 = vmul.f32 %v510, 1.442695
        %v518 = vpow.pop %v517
        %v519 = vadd.f32 %v512, 1.0
        %v520 = vadd.f32 %v514, 1.0
        %v521 = vadd.f32 %v516, 1.0
        %v522 = vadd.f32 %v518, 1.0
        %v523 = vrcp.pop %v519
        %v524 = vmul.f32 1.0, %v523
        %v525 = vrcp.pop %v520
        %v526 = vmul.f32 1.0, %v525
        %v527 = vrcp.pop %v521
        %v528 = vmul.f32 1.0, %v527
        %v529 = vrcp.pop %v522
        %v530 = vmul.f32 1.0, %v529
        %v531 = vpack.c.bf16 %v528, %v524
        %v532 = vpack.c.bf16 %v530, %v526
        %v533 = vld [vmem:[%s3] sm:$0xf]
        %v534 = vld [vmem:[%s3 + $0x4] sm:$0xf]
        %v535 = vld [vmem:[%s4] sm:$0xff]
        %v536 = vld [vmem:[%s4 + $0x8] sm:$0xff]
        %538 = vset.pattern.permute.xlu0 0
        %539 = vperm.xlu0 %538, %v535
        %v540 = vpop.permute.xlu0 %539
        %543 = vset.pattern.permute.xlu0 0
        %544 = vperm.xlu0 %543, %v536
        %v545 = vpop.permute.xlu0 %544
        %v549 = vunpack.c.l.b16 %v533
        %v550 = vunpack.c.l.b16 %v534
        %v551 = vpack.c.b16 %v550, %v549
        %vm552 = vcmask 130048
        %v554 = vsel %vm552, %v551, 0
        %556 = vmatprep.subr.bf16.mxu0 %v532
        %557 = vmatpush1.bf16.msra.mxu0 %v531
        %558 = vmatprep.subr.bf16.mxu0 0
        %559 = vmatpush1.bf16.msra.mxu0 0
        %560 = vmatprep.subr.bf16.mxu0 0
        %561 = vmatpush1.bf16.msra.mxu0 0
        %562 = vmatprep.subr.bf16.mxu0 0
        %563 = vmatpush1.bf16.msra.mxu0 0
        %564 = vmatprep.subr.bf16.mxu0 0
        %565 = vmatpush1.bf16.msra.mxu0 0
        %566 = vmatprep.subr.bf16.mxu0 0
        %567 = vmatpush1.bf16.msra.mxu0 0
        %568 = vmatprep.subr.bf16.mxu0 0
        %569 = vmatpush1.bf16.msra.mxu0 0
        %570 = vmatprep.subr.bf16.mxu0 0
        %571 = vmatpush1.bf16.msra.mxu0 0
        %572 = vmatprep.subr.bf16.mxu0 0
        %573 = vmatpush1.bf16.msra.mxu0 0
        %574 = vmatprep.subr.bf16.mxu0 0
        %575 = vmatpush1.bf16.msra.mxu0 0
        %576 = vmatprep.subr.bf16.mxu0 0
        %577 = vmatpush1.bf16.msra.mxu0 0
        %578 = vmatprep.subr.bf16.mxu0 0
        %579 = vmatpush1.bf16.msra.mxu0 0
        %580 = vmatprep.subr.bf16.mxu0 0
        %581 = vmatpush1.bf16.msra.mxu0 0
        %582 = vmatprep.subr.bf16.mxu0 0
        %583 = vmatpush1.bf16.msra.mxu0 0
        %584 = vmatprep.subr.bf16.mxu0 0
        %585 = vmatpush1.bf16.msra.mxu0 0
        %586 = vmatprep.subr.bf16.mxu0 0
        %587 = vmatpush1.bf16.msra.mxu0 0
        %588 = vmatprep.mubr.bf16.mxu0 0
        %589 = vmatmul.mubr.bf16.gmra.mrb[0].mxu0 %v554
        %v590 = vpop.f32.mrb[0].mxu0
        %v591 = vadd.f32 %v540, %v590
        %v592 = vpop.f32.mrb[0].mxu0
        %v593 = vadd.f32 %v540, %v592
        %v594 = vpop.f32.mrb[0].mxu0
        %v595 = vadd.f32 %v545, %v594
        %v596 = vpop.f32.mrb[0].mxu0
        %v597 = vadd.f32 %v545, %v596
        %598 = vdwg.mxu0
        %v599 = vxor.u32 %v591, 2147483648
        %v600 = vxor.u32 %v593, 2147483648
        %v601 = vxor.u32 %v595, 2147483648
        %v602 = vxor.u32 %v597, 2147483648
        %v603 = vmul.f32 %v599, 1.442695
        %v604 = vpow.pop %v603
        %v605 = vmul.f32 %v600, 1.442695
        %v606 = vpow.pop %v605
        %v607 = vmul.f32 %v601, 1.442695
        %v608 = vpow.pop %v607
        %v609 = vmul.f32 %v602, 1.442695
        %v610 = vpow.pop %v609
        %v611 = vadd.f32 %v604, 1.0
        %v612 = vadd.f32 %v606, 1.0
        %v613 = vadd.f32 %v608, 1.0
        %v614 = vadd.f32 %v610, 1.0
        %v615 = vrcp.pop %v611
        %v616 = vmul.f32 1.0, %v615
        %v617 = vrcp.pop %v612
        %v618 = vmul.f32 1.0, %v617
        %v619 = vrcp.pop %v613
        %v620 = vmul.f32 1.0, %v619
        %v621 = vrcp.pop %v614
        %v622 = vmul.f32 1.0, %v621
        %v623 = vpack.c.bf16 %v620, %v616
        %v624 = vpack.c.bf16 %v622, %v618
        %v625 = vld [vmem:[%s5] sm:$0xf]
        %v626 = vld [vmem:[%s5 + $0x4] sm:$0x1]
        %v627 = vld [vmem:[%s6] sm:$0xff]
        %v628 = vld [vmem:[%s6 + $0x8] sm:$0x3]
        %630 = vset.pattern.permute.xlu0 0
        %631 = vperm.xlu0 %630, %v627
        %v632 = vpop.permute.xlu0 %631
        %635 = vset.pattern.permute.xlu0 0
        %636 = vperm.xlu0 %635, %v628
        %v637 = vpop.permute.xlu0 %636
        %v641 = vunpack.c.l.b16 %v625
        %v642 = vunpack.c.l.b16 %v626
        %v643 = vpack.c.b16 %v642, %v641
        %v645 = vsel %vm552, %v643, 0
        %647 = vmatprep.subr.bf16.mxu0 %v624
        %648 = vmatpush1.bf16.msra.mxu0 %v623
        %649 = vmatprep.subr.bf16.mxu0 0
        %650 = vmatpush1.bf16.msra.mxu0 0
        %651 = vmatprep.subr.bf16.mxu0 0
        %652 = vmatpush1.bf16.msra.mxu0 0
        %653 = vmatprep.subr.bf16.mxu0 0
        %654 = vmatpush1.bf16.msra.mxu0 0
        %655 = vmatprep.subr.bf16.mxu0 0
        %656 = vmatpush1.bf16.msra.mxu0 0
        %657 = vmatprep.subr.bf16.mxu0 0
        %658 = vmatpush1.bf16.msra.mxu0 0
        %659 = vmatprep.subr.bf16.mxu0 0
        %660 = vmatpush1.bf16.msra.mxu0 0
        %661 = vmatprep.subr.bf16.mxu0 0
        %662 = vmatpush1.bf16.msra.mxu0 0
        %663 = vmatprep.subr.bf16.mxu0 0
        %664 = vmatpush1.bf16.msra.mxu0 0
        %665 = vmatprep.subr.bf16.mxu0 0
        %666 = vmatpush1.bf16.msra.mxu0 0
        %667 = vmatprep.subr.bf16.mxu0 0
        %668 = vmatpush1.bf16.msra.mxu0 0
        %669 = vmatprep.subr.bf16.mxu0 0
        %670 = vmatpush1.bf16.msra.mxu0 0
        %671 = vmatprep.subr.bf16.mxu0 0
        %672 = vmatpush1.bf16.msra.mxu0 0
        %673 = vmatprep.subr.bf16.mxu0 0
        %674 = vmatpush1.bf16.msra.mxu0 0
        %675 = vmatprep.subr.bf16.mxu0 0
        %676 = vmatpush1.bf16.msra.mxu0 0
        %677 = vmatprep.subr.bf16.mxu0 0
        %678 = vmatpush1.bf16.msra.mxu0 0
        %679 = vmatprep.mubr.bf16.mxu0 0
        %680 = vmatmul.mubr.bf16.gmra.mrb[0].mxu0 %v645
        %v681 = vpop.f32.mrb[0].mxu0
        %v682 = vadd.f32 %v632, %v681
        %v683 = vpop.f32.mrb[0].mxu0
        %v684 = vadd.f32 %v632, %v683
        %v685 = vpop.f32.mrb[0].mxu0
        %v686 = vadd.f32 %v637, %v685
        %v687 = vpop.f32.mrb[0].mxu0
        %v688 = vadd.f32 %v637, %v687
        %689 = vdwg.mxu0
        %v690 = vxor.u32 %v682, 2147483648
        %v691 = vxor.u32 %v684, 2147483648
        %v692 = vxor.u32 %v686, 2147483648
        %v693 = vxor.u32 %v688, 2147483648
        %v694 = vmul.f32 %v690, 1.442695
        %v695 = vpow.pop %v694
        %v696 = vmul.f32 %v691, 1.442695
        %v697 = vpow.pop %v696
        %v698 = vmul.f32 %v692, 1.442695
        %v699 = vpow.pop %v698
        %v700 = vmul.f32 %v693, 1.442695
        %v701 = vpow.pop %v700
        %v702 = vadd.f32 %v695, 1.0
        %v703 = vadd.f32 %v697, 1.0
        %v704 = vadd.f32 %v699, 1.0
        %v705 = vadd.f32 %v701, 1.0
        %v706 = vrcp.pop %v702
        %v707 = vmul.f32 1.0, %v706
        %v708 = vrcp.pop %v703
        %v709 = vmul.f32 1.0, %v708
        %v710 = vrcp.pop %v704
        %v711 = vmul.f32 1.0, %v710
        %v712 = vrcp.pop %v705
        %v713 = vmul.f32 1.0, %v712
        %714 = vst [vmem:[%s272] sm:$0xff] %v707
        %715 = vst [vmem:[%s272 + $0x8] sm:$0xff] %v709
        %716 = vst [vmem:[%s272 + $0x10] sm:$0x3] %v711
        %717 = vst [vmem:[%s272 + $0x18] sm:$0x3] %v713
        %s718 = sand.u32 %s181, 1
        %s719 = scalar_lea.sflag [#allocation3], %s718
        %s720 = sand.u32 %s181, 1
        %s721 = smul.addr %s720, 32
        %s722 = scalar_lea.vmem [#allocation2], %s721
        // Predicated region
        $region49: #{tpu_custom_call.1} parent=47 // pred_check
          %p723 = pneg %p191
        $region50: #{tpu_custom_call.1} parent=47 // pred_check_branch
          %725 = sbr.rel (%p723) target = $region52
        $region51: #{tpu_custom_call.1} parent=47 // pred_region
          %s726 = smul.u32 2, %s21
          %s728 = ssub.s32 512, 512
          %729 = vsyncadd %s719, %s728
          %s730 = smul.addr %s726, 128
          %s731 = scalar_lea.hbm %s7, %s730
          %s732 = sshll.u32 %s722, 4
          %s733 = int_to_ptr.vmem [resolvable:$true] %s732
          %738 = dma.vmem_to_hbm [thread:$0]  %s733, 512, %s731, %s719, 256, 512, 16
        $region52: #{tpu_custom_call.1} parent=47 // pred_fallthru
          _
      $region48: #{tpu_custom_call.1} parent=5 // pred_fallthru
        _
      %p739 = scmp.le.s32.totalorder 2, %s16
      // Predicated region
      $region53: #{tpu_custom_call.1} parent=5 // pred_check
        %p740 = pneg %p739
      $region54: #{tpu_custom_call.1} parent=5 // pred_check_branch
        %742 = sbr.rel (%p740) target = $region56
      $region55: #{tpu_custom_call.1} parent=5 // pred_region
        %s743 = ssub.s32 %s16, 2
        // Predicated region
        $region57: #{tpu_custom_call.1} parent=55 // pred_check
          %p744 = pneg %p197
        $region58: #{tpu_custom_call.1} parent=55 // pred_check_branch
          %746 = sbr.rel (%p744) target = $region60
        $region59: #{tpu_custom_call.1} parent=55 // pred_region
          %s747 = sand.u32 %s182, 1
          %s748 = scalar_lea.sflag [#allocation3], %s747
          %s749 = sand.u32 %s182, 1
          %s750 = smul.addr %s749, 32
          %s751 = scalar_lea.vmem [#allocation2], %s750
          %752 = dma.done %s748, 512
        $region60: #{tpu_custom_call.1} parent=55 // pred_fallthru
          _
      $region56: #{tpu_custom_call.1} parent=5 // pred_fallthru
        _
    $region6: #{tpu_custom_call.1} parent=1 // loop_footer
      %s20 = sadd.s32 1, %s16
    $region7: #{tpu_custom_call.1} parent=1 // loop_footer_branch
      %15 = sbr.rel target = $region3
    $region8: #{tpu_custom_call.1} parent=1 // loop_exit
      _
    %753 = vsyncpa [#allocation3], 1
    %s754 = scalar_lea.sflag [#allocation3], 1
    %755 = vsyncpa %s754, 1

</llo_original>
